<compile_context>
chip_gen: v6e
topology: v6e:2x2x1
jax: 0.10.0
libtpu: 0.0.40
codegen_flags: <defaults>
</compile_context>

<pallas_src>
import functools
import math

import jax
import jax.numpy as jnp
import numpy as np
from jax.experimental import pallas as pl
from jax.experimental.pallas import tpu as pltpu


def _encoder_kernel(x_ref, tbl_ref, o_ref):
    """x_ref: (tb, C) f32.
    tbl_ref: (C+1, C*F) f32 -- rows 0..C-1: per-column omega rows (2^i in the
             column's own F-wide slot, 0 elsewhere); row C: phase row (0 for
             sin lanes, pi/2 for cos lanes).
    o_ref:  (tb, C*F) f32, written with a single unmasked full-block store."""
    C = x_ref.shape[1]                       # static Python int
    x = x_ref[...]                           # (tb, C)
    tbl = tbl_ref[...]                       # (C+1, C*F)

    arg = tbl[C:C + 1, :]                    # phase row, (1, C*F)
    for c in range(C):                       # static loop, C is small
        # (tb,1) * (1,C*F) broadcast multiply-add on the VPU; exact (power of 2)
        arg = arg + x[:, c:c + 1] * tbl[c:c + 1, :]

    # sin(z) on sin lanes, sin(z + pi/2) == cos(z) on cos lanes: one EUP stream.
    o_ref[...] = jnp.sin(arg)


def _round_up(v: int, m: int) -> int:
    return ((v + m - 1) // m) * m


def _pick_row_group(batch: int, cols: int, feat: int, max_group_cols: int = 32) -> int:
    """Group `g` consecutive batch rows into one kernel row so the output minor
    dim g*C*F becomes a multiple of 128 lanes (lane-dense stores).  Valid
    because the encoding acts independently per input scalar and both x and the
    flat output are row-major, so (B, C) == (B/g, g*C) element-for-element."""
    cf = cols * feat
    if cf % 128 == 0 or batch <= 1:
        return 1
    g = 128 // math.gcd(cf, 128)             # smallest g with g*C*F % 128 == 0
    if batch % g == 0 and g * cols <= max_group_cols:
        return g
    return 1


def _pick_block_rows(batch: int, out_row_bytes: int, in_row_bytes: int,
                     target_out_bytes: int = 1 << 20,
                     vmem_budget_bytes: int = 8 << 20,
                     min_grid_steps: int = 4) -> int:
    """Rows per block: ~1 MiB of (lane-dense, so logical==physical) output per
    block, >= min_grid_steps blocks for mid/large batches so the output DMA
    pipelines and both v7x TensorCores get work, and the double-buffered
    (input + output) VMEM footprint stays under ~8 MiB -- safe under the 16 MiB
    v5e / 32 MiB v6e+v7x scoped-VMEM defaults with headroom for temporaries."""
    if batch <= 8:
        return batch
    tb_target = max(8, target_out_bytes // out_row_bytes)
    tb_vmem = max(8, vmem_budget_bytes // (2 * (out_row_bytes + in_row_bytes)))
    cap_steps = max(8, _round_up(-(-batch // min_grid_steps), 8))
    tb = min(tb_target, tb_vmem, cap_steps)
    tb = max(8, (tb // 8) * 8)               # sublane-aligned tiling of B
    return batch if tb >= batch else tb


@functools.partial(jax.jit, static_argnums=(1,))
def encoder_pallas(x: jax.Array, d_max: int) -> jax.Array:
    """Pallas TPU forward of the PyTorch Encoder: x (B, C) -> (B, C*2*d)."""
    if x.ndim != 2:
        raise ValueError("Encoder expects a 2D input of shape (batch, columns)")
    x = x.astype(jnp.float32)
    B, C = x.shape
    d = int(d_max)
    F = 2 * d

    # Optional row grouping for lane density (g == 1 when C*F is already %128).
    g = _pick_row_group(B, C, F)
    Bg, Cg = B // g, C * g
    CFg = Cg * F
    xg = x.reshape(Bg, Cg)                   # contiguous regroup, free

    # Compile-time constants table (exact powers of two; pi/2 rounding ~4e-8).
    j = np.arange(F)
    omega_row = (2.0 ** (j % d)).astype(np.float32)          # [2^0..2^{d-1}] twice
    phase_row = np.where(j >= d, np.pi / 2.0, 0.0).astype(np.float32)
    tbl_np = np.zeros((Cg + 1, CFg), dtype=np.float32)
    for c in range(Cg):
        tbl_np[c, c * F:(c + 1) * F] = omega_row
    tbl_np[Cg, :] = np.tile(phase_row, Cg)
    tbl = jnp.asarray(tbl_np)

    # Physical (lane-padded) bytes per batch row in VMEM.
    out_row_bytes = _round_up(CFg, 128) * 4
    in_row_bytes = _round_up(Cg, 128) * 4
    tb = _pick_block_rows(Bg, out_row_bytes, in_row_bytes)
    grid = (pl.cdiv(Bg, tb),)

    cost = pl.CostEstimate(
        flops=2 * B * C * F,                 # omega multiply + phase add
        transcendentals=B * C * F,           # one sin per output element
        bytes_accessed=B * C * 4 + int(tbl.size) * 4 + B * C * F * 4,
    )

    out = pl.pallas_call(
        _encoder_kernel,
        out_shape=jax.ShapeDtypeStruct((Bg, CFg), jnp.float32),
        grid_spec=pltpu.PrefetchScalarGridSpec(
            num_scalar_prefetch=0,
            grid=grid,
            in_specs=[
                pl.BlockSpec((tb, Cg), lambda i: (i, 0)),
                # Constant block index -> fetched once, no per-step re-DMA.
                pl.BlockSpec((Cg + 1, CFg), lambda i: (0, 0)),
            ],
            out_specs=pl.BlockSpec((tb, CFg), lambda i: (i, 0)),
        ),
        compiler_params=pltpu.CompilerParams(
            dimension_semantics=("parallel",),
        ),
        cost_estimate=cost,
    )(xg, tbl)

    # (Bg, Cg*F) -> (B, C*2*d): pure contiguous-dim regroup, no relayout.
    return out.reshape(B, C * F)


def encoder_reference(x: jax.Array, d_max: int) -> jax.Array:
    """Pure-JAX reference matching the PyTorch module exactly."""
    omega = jnp.asarray((2.0 ** np.arange(d_max)).astype(np.float32))
    scaled = x.astype(jnp.float32)[:, :, None] * omega[None, None, :]   # (B, C, d)
    pe = jnp.stack([jnp.sin(scaled), jnp.cos(scaled)], axis=2)          # (B, C, 2, d)
    return pe.reshape(x.shape[0], -1)


if __name__ == "__main__":
    d_max = 8
    B, C = 2, 4                               # small shapes implied by the module

    x = jax.random.normal(jax.random.PRNGKey(0), (B, C), dtype=jnp.float32)

    y = encoder_pallas(x, d_max)
    jax.block_until_ready(y)
    y_ref = encoder_reference(x, d_max)
    assert y.shape == (B, C * 2 * d_max)
    # Tolerance covers sin/cos implementation differences between Mosaic and
    # XLA plus the cos(z)=sin(z+pi/2) argument rounding for |z| up to a few
    # hundred (all well below 1e-3).
    assert jnp.allclose(y, y_ref, atol=1e-3, rtol=1e-3), "mismatch vs reference"

    # Larger batch exercises the multi-block 'parallel' grid path (4 blocks,
    # lane-dense 128-wide output rows).
    xb = jax.random.uniform(jax.random.PRNGKey(1), (4096, 8),
                            dtype=jnp.float32, minval=-1.0, maxval=1.0)
    yb = encoder_pallas(xb, d_max)
    jax.block_until_ready(yb)
    yb_ref = encoder_reference(xb, d_max)
    assert jnp.allclose(yb, yb_ref, atol=1e-3, rtol=1e-3), "mismatch (large batch)"

    print("KERNEL_OK")
</pallas_src>

<mosaic_0001>
module attributes {stable_mosaic.version = 11 : i64} {
  func.func @_encoder_kernel(%arg0: i32, %arg1: memref<1x8xf32, #tpu.memory_space<vmem>>, %arg2: memref<9x128xf32, #tpu.memory_space<vmem>>, %arg3: memref<1x128xf32, #tpu.memory_space<vmem>>) attributes {dimension_semantics = [#tpu.dimension_semantics<parallel>], iteration_bounds = array<i64: 1>, scalar_prefetch = 0 : i64, scratch_operands = 0 : i64, tpu.core_type = #tpu.core_type<tc>, window_params = [{transform_indices = @transform_0, window_bounds = array<i64: 1, 8>}, {pipeline_mode = #tpu.pipeline_mode<synchronous>, transform_indices = @transform_1, window_bounds = array<i64: 9, 128>}, {transform_indices = @transform_2, window_bounds = array<i64: 1, 128>}]} {
    %c0 = arith.constant 0 : index
    %c0_0 = arith.constant 0 : index
    %0 = vector.load %arg1[%c0, %c0_0] : memref<1x8xf32, #tpu.memory_space<vmem>>, vector<1x8xf32>
    %c0_1 = arith.constant 0 : index
    %c0_2 = arith.constant 0 : index
    %1 = vector.load %arg2[%c0_1, %c0_2] : memref<9x128xf32, #tpu.memory_space<vmem>>, vector<9x128xf32>
    %2 = vector.extract_strided_slice %1 {offsets = [8, 0], sizes = [1, 128], strides = [1, 1]} : vector<9x128xf32> to vector<1x128xf32>
    %3 = vector.extract_strided_slice %0 {offsets = [0, 0], sizes = [1, 1], strides = [1, 1]} : vector<1x8xf32> to vector<1x1xf32>
    %4 = vector.extract_strided_slice %1 {offsets = [0, 0], sizes = [1, 128], strides = [1, 1]} : vector<9x128xf32> to vector<1x128xf32>
    %5 = vector.broadcast %3 : vector<1x1xf32> to vector<1x128xf32>
    %6 = arith.mulf %5, %4 : vector<1x128xf32>
    %7 = arith.addf %2, %6 : vector<1x128xf32>
    %8 = vector.extract_strided_slice %0 {offsets = [0, 1], sizes = [1, 1], strides = [1, 1]} : vector<1x8xf32> to vector<1x1xf32>
    %9 = vector.extract_strided_slice %1 {offsets = [1, 0], sizes = [1, 128], strides = [1, 1]} : vector<9x128xf32> to vector<1x128xf32>
    %10 = vector.broadcast %8 : vector<1x1xf32> to vector<1x128xf32>
    %11 = arith.mulf %10, %9 : vector<1x128xf32>
    %12 = arith.addf %7, %11 : vector<1x128xf32>
    %13 = vector.extract_strided_slice %0 {offsets = [0, 2], sizes = [1, 1], strides = [1, 1]} : vector<1x8xf32> to vector<1x1xf32>
    %14 = vector.extract_strided_slice %1 {offsets = [2, 0], sizes = [1, 128], strides = [1, 1]} : vector<9x128xf32> to vector<1x128xf32>
    %15 = vector.broadcast %13 : vector<1x1xf32> to vector<1x128xf32>
    %16 = arith.mulf %15, %14 : vector<1x128xf32>
    %17 = arith.addf %12, %16 : vector<1x128xf32>
    %18 = vector.extract_strided_slice %0 {offsets = [0, 3], sizes = [1, 1], strides = [1, 1]} : vector<1x8xf32> to vector<1x1xf32>
    %19 = vector.extract_strided_slice %1 {offsets = [3, 0], sizes = [1, 128], strides = [1, 1]} : vector<9x128xf32> to vector<1x128xf32>
    %20 = vector.broadcast %18 : vector<1x1xf32> to vector<1x128xf32>
    %21 = arith.mulf %20, %19 : vector<1x128xf32>
    %22 = arith.addf %17, %21 : vector<1x128xf32>
    %23 = vector.extract_strided_slice %0 {offsets = [0, 4], sizes = [1, 1], strides = [1, 1]} : vector<1x8xf32> to vector<1x1xf32>
    %24 = vector.extract_strided_slice %1 {offsets = [4, 0], sizes = [1, 128], strides = [1, 1]} : vector<9x128xf32> to vector<1x128xf32>
    %25 = vector.broadcast %23 : vector<1x1xf32> to vector<1x128xf32>
    %26 = arith.mulf %25, %24 : vector<1x128xf32>
    %27 = arith.addf %22, %26 : vector<1x128xf32>
    %28 = vector.extract_strided_slice %0 {offsets = [0, 5], sizes = [1, 1], strides = [1, 1]} : vector<1x8xf32> to vector<1x1xf32>
    %29 = vector.extract_strided_slice %1 {offsets = [5, 0], sizes = [1, 128], strides = [1, 1]} : vector<9x128xf32> to vector<1x128xf32>
    %30 = vector.broadcast %28 : vector<1x1xf32> to vector<1x128xf32>
    %31 = arith.mulf %30, %29 : vector<1x128xf32>
    %32 = arith.addf %27, %31 : vector<1x128xf32>
    %33 = vector.extract_strided_slice %0 {offsets = [0, 6], sizes = [1, 1], strides = [1, 1]} : vector<1x8xf32> to vector<1x1xf32>
    %34 = vector.extract_strided_slice %1 {offsets = [6, 0], sizes = [1, 128], strides = [1, 1]} : vector<9x128xf32> to vector<1x128xf32>
    %35 = vector.broadcast %33 : vector<1x1xf32> to vector<1x128xf32>
    %36 = arith.mulf %35, %34 : vector<1x128xf32>
    %37 = arith.addf %32, %36 : vector<1x128xf32>
    %38 = vector.extract_strided_slice %0 {offsets = [0, 7], sizes = [1, 1], strides = [1, 1]} : vector<1x8xf32> to vector<1x1xf32>
    %39 = vector.extract_strided_slice %1 {offsets = [7, 0], sizes = [1, 128], strides = [1, 1]} : vector<9x128xf32> to vector<1x128xf32>
    %40 = vector.broadcast %38 : vector<1x1xf32> to vector<1x128xf32>
    %41 = arith.mulf %40, %39 : vector<1x128xf32>
    %42 = arith.addf %37, %41 : vector<1x128xf32>
    %43 = math.sin %42 : vector<1x128xf32>
    %c0_3 = arith.constant 0 : index
    %c0_4 = arith.constant 0 : index
    %44 = vector.load %arg3[%c0_3, %c0_4] : memref<1x128xf32, #tpu.memory_space<vmem>>, vector<1x128xf32>
    tpu.vector_store %arg3[%c0_3, %c0_4], %43 {strides = array<i32>} : memref<1x128xf32, #tpu.memory_space<vmem>>, vector<1x128xf32>,
    return
  }
  func.func @transform_0(%arg0: i32) -> (i32, i32) {
    %c0_i32 = arith.constant 0 : i32
    %c0_i32_0 = arith.constant 0 : i32
    return %arg0, %c0_i32 : i32, i32
  }
  func.func @transform_1(%arg0: i32) -> (i32, i32) {
    %c0_i32 = arith.constant 0 : i32
    %c0_i32_0 = arith.constant 0 : i32
    %c0_i32_1 = arith.constant 0 : i32
    return %c0_i32, %c0_i32_0 : i32, i32
  }
  func.func @transform_2(%arg0: i32) -> (i32, i32) {
    %c0_i32 = arith.constant 0 : i32
    %c0_i32_0 = arith.constant 0 : i32
    return %arg0, %c0_i32 : i32, i32
  }
}

</mosaic_0001>

<llo_original>
// kernel: encoder_pallas.1
$region0: #{encoder_pallas.1}
  #allocation0 [shape = 'u32[]', space=smem, size = 0x4, offset = 0x4, fixed_abs, tag = 'smem constant byte address 0x4 - core index']
  #allocation1 [shape = 'u32[144,128]{1,0:T(1,128)}', space=vmem, size = 0x12000, scoped, tag = 'internal scratch']
  %s0 = inlined_call_operand.vmem [shape: f32[1,8], index: 0, kind: input, shape index: {}]
  %s1 = inlined_call_operand.hbm [shape: f32[9,128], index: 1, kind: input, shape index: {}]
  %s2 = inlined_call_operand.vmem [shape: f32[1,128], index: 2, kind: output, shape index: {}]
  %s3 = sld [smem:[#allocation0]]
  $region22: #{encoder_pallas.1} parent=0
    _
  %s5 = ssub.s32 1, %s3
  %s6 = scalar_select 0, %s5, %s3
  $region1: #{encoder_pallas.1} parent=0
    #allocation2 [shape = 'u8[8192]{0}', space=vmem, size = 0x2000, scoped, tag = 'input window, operand 1, single buffered']
    #allocation3 [shape = 's32[1]{0}', space=sflag, size = 0x4, scoped, tag = 'scoped memory for encoder_pallas.1']
    %7 = vsyncpa [#allocation3], 0
    // Predicated region
    $region2: #{encoder_pallas.1} parent=1 // pred_check
      _
    $region3: #{encoder_pallas.1} parent=1 // pred_check_branch
      %9 = sbr.rel (0) target = $region5
    $region4: #{encoder_pallas.1} parent=1 // pred_region
      _
    $region5: #{encoder_pallas.1} parent=1 // pred_fallthru
      _
    // Predicated region
    $region6: #{encoder_pallas.1} parent=1 // pred_check
      _
    $region7: #{encoder_pallas.1} parent=1 // pred_check_branch
      %11 = sbr.rel (0) target = $region9
    $region8: #{encoder_pallas.1} parent=1 // pred_region
      %s13 = ssub.s32 256, 256
      %14 = vsyncadd [#allocation3], %s13
      %s15 = sshll.u32 [#allocation2], 4
      %s16 = int_to_ptr.vmem [resolvable:$true] %s15
      %21 = dma.hbm_to_vmem [thread:$0]  %s1, 256, %s16, [#allocation3], 128, 128, 8
    $region9: #{encoder_pallas.1} parent=1 // pred_fallthru
      _
    // Predicated region
    $region10: #{encoder_pallas.1} parent=1 // pred_check
      _
    $region11: #{encoder_pallas.1} parent=1 // pred_check_branch
      %23 = sbr.rel (0) target = $region13
    $region12: #{encoder_pallas.1} parent=1 // pred_region
      %24 = dma.done [#allocation3], 256
    $region13: #{encoder_pallas.1} parent=1 // pred_fallthru
      _
    %v25 = vld [vmem:[%s0] sm:$0x1]
    %v26 = vld [vmem:[#allocation2] sm:$0xff]
    %v27 = vld [vmem:[#allocation2 + $0x8] sm:$0x1]
    %29 = vset.pattern.permute.xlu0 0
    %30 = vperm.xlu0 %29, %v25
    %v31 = vpop.permute.xlu0 %30
    %v33 = vlaneseq
    %v34 = vshrl.u32 %v33, 7
    %v35 = vsub.s32 0, %v34
    %v36 = vrot.slane %v31, %v35
    %v37 = vmul.f32 %v36, %v26
    %v38 = vadd.f32 %v27, %v37
    %39 = vset.pattern.permute.xlu0 1
    %40 = vperm.xlu0 %39, %v25
    %v41 = vpop.permute.xlu0 %40
    %v43 = vlaneseq
    %v44 = vshrl.u32 %v43, 7
    %v45 = vsub.s32 0, %v44
    %v46 = vrot.slane %v41, %v45
    %v47 = vmul.f32 %v46, %v26
    %v49 = vrot.slane %v47, 1
    %v51 = vadd.f32 %v38, %v49
    %52 = vset.pattern.permute.xlu0 2
    %53 = vperm.xlu0 %52, %v25
    %v54 = vpop.permute.xlu0 %53
    %v56 = vlaneseq
    %v57 = vshrl.u32 %v56, 7
    %v58 = vsub.s32 0, %v57
    %v59 = vrot.slane %v54, %v58
    %v60 = vmul.f32 %v59, %v26
    %v62 = vrot.slane %v60, 2
    %v64 = vadd.f32 %v51, %v62
    %65 = vset.pattern.permute.xlu0 3
    %66 = vperm.xlu0 %65, %v25
    %v67 = vpop.permute.xlu0 %66
    %v69 = vlaneseq
    %v70 = vshrl.u32 %v69, 7
    %v71 = vsub.s32 0, %v70
    %v72 = vrot.slane %v67, %v71
    %v73 = vmul.f32 %v72, %v26
    %v75 = vrot.slane %v73, 3
    %v77 = vadd.f32 %v64, %v75
    %78 = vset.pattern.permute.xlu0 4
    %79 = vperm.xlu0 %78, %v25
    %v80 = vpop.permute.xlu0 %79
    %v82 = vlaneseq
    %v83 = vshrl.u32 %v82, 7
    %v84 = vsub.s32 0, %v83
    %v85 = vrot.slane %v80, %v84
    %v86 = vmul.f32 %v85, %v26
    %v88 = vrot.slane %v86, 4
    %v90 = vadd.f32 %v77, %v88
    %91 = vset.pattern.permute.xlu0 5
    %92 = vperm.xlu0 %91, %v25
    %v93 = vpop.permute.xlu0 %92
    %v95 = vlaneseq
    %v96 = vshrl.u32 %v95, 7
    %v97 = vsub.s32 0, %v96
    %v98 = vrot.slane %v93, %v97
    %v99 = vmul.f32 %v98, %v26
    %v101 = vrot.slane %v99, 5
    %v103 = vadd.f32 %v90, %v101
    %104 = vset.pattern.permute.xlu0 6
    %105 = vperm.xlu0 %104, %v25
    %v106 = vpop.permute.xlu0 %105
    %v108 = vlaneseq
    %v109 = vshrl.u32 %v108, 7
    %v110 = vsub.s32 0, %v109
    %v111 = vrot.slane %v106, %v110
    %v112 = vmul.f32 %v111, %v26
    %v114 = vrot.slane %v112, 6
    %v116 = vadd.f32 %v103, %v114
    %117 = vset.pattern.permute.xlu0 7
    %118 = vperm.xlu0 %117, %v25
    %v119 = vpop.permute.xlu0 %118
    %v121 = vlaneseq
    %v122 = vshrl.u32 %v121, 7
    %v123 = vsub.s32 0, %v122
    %v124 = vrot.slane %v119, %v123
    %v125 = vmul.f32 %v124, %v26
    %v127 = vrot.slane %v125, 7
    %v129 = vadd.f32 %v116, %v127
    %v130 = vand.u32 2147483647, %v129
    %vm131 = vcmp.le.f32.partialorder %v130, 0.7853982
    %vm132 = vcmp.lt.s32.totalorder %v129, 0
    %v133 = vand.u32 %v129, 2139095040
    %v134 = vshrl.u32 %v133, 23
    %v135 = vsub.s32 %v134, 127
    %v136 = vand.u32 2147483647, %v129
    %v137 = vand.u32 %v136, 8388607
    %v138 = vor.u32 %v137, 8388608
    %v139 = vsub.s32 0, %v138
    %v140 = vadd.s32 %v135, 1
    %vm141 = vcmp.gt.s32.totalorder %v140, 0
    %v142 = vsel %vm141, %v140, 0
    %v143 = vshrl.u32 %v142, 5
    %v144 = vand.u32 %v142, 31
    %v145 = vsub.s32 32, %v144
    %v146 = vshrl.u32 683565275, %v145
    %v147 = vshll.u32 683565275, %v144
    %v148 = vshrl.u32 2475754826, %v145
    %v149 = vor.u32 %v147, %v148
    %v150 = vshll.u32 2475754826, %v144
    %v151 = vshrl.u32 2131351028, %v145
    %v152 = vor.u32 %v150, %v151
    %v153 = vshll.u32 2131351028, %v144
    %v154 = vshrl.u32 2102212464, %v145
    %v155 = vor.u32 %v153, %v154
    %v156 = vshll.u32 2102212464, %v144
    %v157 = vshrl.u32 920167782, %v145
    %v158 = vor.u32 %v156, %v157
    %v159 = vshll.u32 920167782, %v144
    %v160 = vshrl.u32 1326507024, %v145
    %v161 = vor.u32 %v159, %v160
    %vm162 = vcmp.lt.s32.totalorder %v143, 1
    %vm163 = vcmp.lt.s32.totalorder %v143, 2
    %vm164 = vcmp.lt.s32.totalorder %v143, 3
    %vm165 = vcmp.lt.s32.totalorder %v143, 4
    %v166 = vsel %vm162, %v146, %v149
    %v167 = vsel %vm165, %v155, 2102212464
    %v168 = vsel %vm164, %v152, %v167
    %v169 = vsel %vm163, %v166, %v168
    %v170 = vsel %vm162, %v149, %v152
    %v171 = vsel %vm165, %v158, 920167782
    %v172 = vsel %vm164, %v155, %v171
    %v173 = vsel %vm163, %v170, %v172
    %v174 = vsel %vm162, %v152, %v155
    %v175 = vsel %vm165, %v161, 1326507024
    %v176 = vsel %vm164, %v158, %v175
    %v177 = vsel %vm163, %v174, %v176
    %v178 = vshll.u32 %v138, 8
    %v179 = vmul.u32.u64.compose %v178, %v177
    %v180 = vextract.low.u32 %v179
    %v181 = vextract.high.u32 %v179
    %v182 = vmul.u32.u64.compose %v178, %v173
    %v183 = vextract.low.u32 %v182
    %v184 = vextract.high.u32 %v182
    %v185 = vmul.u32 %v178, %v169
    %v186 = vadd.s32 %v181, %v183
    %vm187 = vc.u32 %v181, %v183
    %v188 = vadd.s32 %v184, 1
    %v189 = vsel %vm187, %v188, %v184
    %v190 = vadd.s32 %v185, %v189
    %v191 = vadd.s32 %v190, 536870912
    %v192 = vshrl.u32 %v191, 30
    %v193 = vshll.u32 %v192, 30
    %v194 = vsub.s32 %v190, %v193
    %vm195 = vcmp.lt.s32.totalorder %v194, 0
    %v196 = vsub.s32 0, %v194
    %v197 = vsel %vm195, %v196, %v194
    %v198 = vclz %v197
    %v199 = vsub.s32 %v198, 2
    %vm200 = vcmp.gt.s32.totalorder 0, %v199
    %v201 = vsel %vm200, 0, %v199
    %v202 = vsub.s32 32, %v201
    %v203 = vshll.u32 %v194, %v201
    %v204 = vshrl.u32 %v186, %v202
    %v205 = vor.u32 %v203, %v204
    %v206 = vsub.s32 4294967266, %v201
    %v207 = vadd.s32 %v206, 127
    %v208 = vshll.u32 %v207, 23
    %v209 = vor.u32 4788187, %v208
    %v210 = vand.u32 2147483647, %v209
    %v212 = vcvt.s32.f32 %v205
    %v213 = vmul.f32 %v212, %v210
    %v214 = vxor.u32 %v213, 2147483648
    %v215 = vsel %vm132, %v214, %v213
    %v216 = vsub.s32 4, %v192
    %v217 = vsel %vm132, %v216, %v192
    %v218 = vsel %vm131, %v129, %v215
    %v219 = vsel %vm131, 0, %v217
    %v220 = vcosq.f32.pop %v218
    %v221 = vsinq.f32.pop %v218
    %vm222 = vweird.f32 %v129
    %v223 = vadd.s32 %v219, 3
    %v224 = vand.u32 %v223, 3
    %vm225 = vcmp.lt.s32.totalorder %v224, 2
    %vm226 = vcmp.eq.s32.totalorder %v224, 0
    %v227 = vxor.u32 %v221, 2147483648
    %v228 = vsel %vm226, %v220, %v227
    %vm229 = vcmp.eq.s32.totalorder %v224, 2
    %v230 = vxor.u32 %v220, 2147483648
    %v231 = vsel %vm229, %v230, %v221
    %v232 = vsel %vm225, %v228, %v231
    %v233 = vsel %vm222, nan, %v232
    %234 = vst [vmem:[%s2] sm:$0x1] %v233
    // Predicated region
    $region14: #{encoder_pallas.1} parent=1 // pred_check
      _
    $region15: #{encoder_pallas.1} parent=1 // pred_check_branch
      %236 = sbr.rel (0) target = $region17
    $region16: #{encoder_pallas.1} parent=1 // pred_region
      _
    $region17: #{encoder_pallas.1} parent=1 // pred_fallthru
      _
    // Predicated region
    $region18: #{encoder_pallas.1} parent=1 // pred_check
      _
    $region19: #{encoder_pallas.1} parent=1 // pred_check_branch
      %238 = sbr.rel (0) target = $region21
    $region20: #{encoder_pallas.1} parent=1 // pred_region
      _
    $region21: #{encoder_pallas.1} parent=1 // pred_fallthru
      _
    %239 = vsyncpa [#allocation3], 1

</llo_original>
